<compile_context>
chip_gen: v5e
topology: v5e:2x2
jax: 0.10.0
libtpu: 0.0.40
codegen_flags: <defaults>
</compile_context>

<pallas_src>
import jax
import jax.numpy as jnp
from jax import lax
from jax.experimental import pallas as pl
from jax.experimental.pallas import tpu as pltpu

LANE = 128


def _make_tdgs_kernel(K):
    def kernel(*refs):
        inv_t_ref = refs[0]
        x_refs = refs[1:1 + K]
        o_ref = refs[1 + K]

        inv_t = inv_t_ref[...]                        # (TR, 128) f32 = 1/temps

        # Pass 1: ||x||^2 over the K patch elements (pure per-lane VPU).
        sumsq = None
        for r in x_refs:
            xx = r[...].astype(jnp.float32)
            sq = xx * xx
            sumsq = sq if sumsq is None else sumsq + sq

        # normalize(x)/temps == x * (rsqrt(clamp(sumsq,1e-16)) * (1/temps))
        # (clamp(sumsq, 1e-16) is equivalent to clamp(norm, 1e-8))
        scale = lax.rsqrt(jnp.maximum(sumsq, 1e-16)) * inv_t

        # Pass 2: running max of the logits (recompute x*scale; keep nothing).
        m = None
        for r in x_refs:
            lg = r[...].astype(jnp.float32) * scale
            m = lg if m is None else jnp.maximum(m, lg)

        # Pass 3: fused exp / denominator / weighted sum.
        denom = None
        num = None
        for r in x_refs:
            xx = r[...].astype(jnp.float32)
            e = jnp.exp(xx * scale - m)
            denom = e if denom is None else denom + e
            num = e * xx if num is None else num + e * xx

        # Exact divide for the expectation (denom in [1, K]: cheap, well
        # conditioned) — keeps parity with the PyTorch reference tight.
        o_ref[...] = (num / denom).astype(o_ref.dtype)

    return kernel


def tdgs_pooling2d(x, temperature, epsilon, *, kernel_size=2, stride=2,
                   tile_rows=2048, vmem_limit_bytes=40 * 1024 * 1024):
    """Deterministic (eval-mode) TDGS pooling.  x: [B, C, H, W]."""
    B, C, H, W = x.shape
    k, s = kernel_size, stride
    H_out = (H - k) // s + 1
    W_out = (W - k) // s + 1
    K = k * k

    M = C * H_out * W_out                       # per-batch output elements
    R = (M + LANE - 1) // LANE                  # rows of 128 lanes
    if R <= tile_rows:
        TR = R                                  # full-dim block (always legal)
    else:
        n_blocks = (R + tile_rows - 1) // tile_rows
        rows_per_block = (R + n_blocks - 1) // n_blocks
        TR = ((rows_per_block + 7) // 8) * 8    # multiple of 8 sublanes
    R_pad = ((R + TR - 1) // TR) * TR
    M_pad = R_pad * LANE

    # K strided views of x (this IS the unfold), each shaped like the output
    # (B, C, H_out, W_out) -> (B, R_pad, 128).  With allow_input_fusion these
    # slice/reshape/pad producers are fused into the pallas operands instead
    # of being written back to HBM as K output-sized intermediates.
    x_slices = []
    for kh in range(k):
        for kw in range(k):
            sl = x[:, :, kh:kh + s * H_out:s, kw:kw + s * W_out:s]
            sl = sl.reshape(B, M)
            if M_pad != M:
                sl = jnp.pad(sl, ((0, 0), (0, M_pad - M)))
            x_slices.append(sl.reshape(B, R_pad, LANE))

    # Batch-invariant 1/temps, computed once host-side (tiny; also removes one
    # EUP reciprocal per element from the kernel).  Pad value 1.0 keeps the
    # padded tail finite.
    inv_t = 1.0 / (jax.nn.relu(temperature).astype(jnp.float32)
                   + epsilon.astype(jnp.float32))
    inv_t = inv_t.reshape(M)
    if M_pad != M:
        inv_t = jnp.pad(inv_t, (0, M_pad - M), constant_values=1.0)
    inv_t = inv_t.reshape(R_pad, LANE)

    # Batch innermost: the inv_t block index is constant across consecutive
    # grid steps, so the pipeliner skips re-DMAing it for every batch.
    grid = (R_pad // TR, B)

    t_spec = pl.BlockSpec((TR, LANE), lambda r, b: (r, 0))           # batch-invariant
    x_spec = pl.BlockSpec((None, TR, LANE), lambda r, b: (b, r, 0))  # batch squeezed
    o_spec = pl.BlockSpec((None, TR, LANE), lambda r, b: (b, r, 0))

    out = pl.pallas_call(
        _make_tdgs_kernel(K),
        out_shape=jax.ShapeDtypeStruct((B, R_pad, LANE), x.dtype),
        grid_spec=pltpu.PrefetchScalarGridSpec(
            num_scalar_prefetch=0,
            grid=grid,
            in_specs=[t_spec] + [x_spec] * K,
            out_specs=o_spec,
        ),
        compiler_params=pltpu.CompilerParams(
            dimension_semantics=("parallel", "parallel"),
            vmem_limit_bytes=vmem_limit_bytes,
            allow_input_fusion=[True] * (K + 1),
        ),
    )(inv_t, *x_slices)

    return out.reshape(B, M_pad)[:, :M].reshape(B, C, H_out, W_out)


def _reference(x, temperature, epsilon, kernel_size=2, stride=2):
    """Pure-JAX reference of the deterministic path (mirrors the PyTorch code)."""
    B, C, H, W = x.shape
    k, s = kernel_size, stride
    H_out = (H - k) // s + 1
    W_out = (W - k) // s + 1
    patches = []
    for kh in range(k):
        for kw in range(k):
            patches.append(x[:, :, kh:kh + s * H_out:s, kw:kw + s * W_out:s])
    x_unf = jnp.stack(patches, axis=-1)
    norm = jnp.maximum(jnp.linalg.norm(x_unf, axis=-1, keepdims=True), 1e-8)
    temps = jax.nn.relu(temperature) + epsilon
    logits = (x_unf / norm) / temps[None, :, :, :, None]
    probs = jax.nn.softmax(logits, axis=-1)
    return jnp.sum(probs * x_unf, axis=-1)


if __name__ == "__main__":
    # Module config: kernel_size=2, stride=2, in_channels=4, H_out=8, W_out=8,
    # initial_value=1  ->  input x: [B=2, C=4, H=16, W=16]
    B, C, H, W = 2, 4, 16, 16
    kernel_size, stride = 2, 2
    H_out = (H - kernel_size) // stride + 1
    W_out = (W - kernel_size) // stride + 1

    key = jax.random.PRNGKey(0)
    # "works well only with full-positive activation" -> use positive inputs
    x = jax.nn.relu(jax.random.normal(key, (B, C, H, W), dtype=jnp.float32)) + 0.1

    # Deterministic parameter init exactly as in __init__
    temperature = jnp.ones((C, H_out, W_out), dtype=jnp.float32) * 1.0   # initial_value=1
    epsilon = jnp.ones((C, H_out, W_out), dtype=jnp.float32) * 0.01

    out = tdgs_pooling2d(x, temperature, epsilon,
                         kernel_size=kernel_size, stride=stride)
    out = jax.block_until_ready(out)

    ref = _reference(x, temperature, epsilon, kernel_size, stride)
    assert out.shape == (B, C, H_out, W_out)
    assert jnp.allclose(out, ref, atol=1e-4, rtol=1e-4), "mismatch vs reference"

    print("KERNEL_OK")
</pallas_src>

<mosaic_0001>
module attributes {stable_mosaic.version = 11 : i64} {
  func.func @kernel(%arg0: i32, %arg1: i32, %arg2: memref<2x128xf32, #tpu.memory_space<vmem>>, %arg3: memref<1x2x128xf32, #tpu.memory_space<vmem>>, %arg4: memref<1x2x128xf32, #tpu.memory_space<vmem>>, %arg5: memref<1x2x128xf32, #tpu.memory_space<vmem>>, %arg6: memref<1x2x128xf32, #tpu.memory_space<vmem>>, %arg7: memref<1x2x128xf32, #tpu.memory_space<vmem>>) attributes {dimension_semantics = [#tpu.dimension_semantics<parallel>, #tpu.dimension_semantics<parallel>], iteration_bounds = array<i64: 1, 2>, scalar_prefetch = 0 : i64, scratch_operands = 0 : i64, tpu.core_type = #tpu.core_type<tc>, window_params = [{transform_indices = @transform_0, window_bounds = array<i64: 2, 128>}, {transform_indices = @transform_1, window_bounds = array<i64: 1, 2, 128>}, {transform_indices = @transform_2, window_bounds = array<i64: 1, 2, 128>}, {transform_indices = @transform_3, window_bounds = array<i64: 1, 2, 128>}, {transform_indices = @transform_4, window_bounds = array<i64: 1, 2, 128>}, {transform_indices = @transform_5, window_bounds = array<i64: 1, 2, 128>}]} {
    %c0 = arith.constant 0 : index
    %c0_0 = arith.constant 0 : index
    %0 = vector.load %arg2[%c0, %c0_0] : memref<2x128xf32, #tpu.memory_space<vmem>>, vector<2x128xf32>
    %c0_1 = arith.constant 0 : index
    %c0_2 = arith.constant 0 : index
    %c0_3 = arith.constant 0 : index
    %1 = vector.load %arg3[%c0_1, %c0_2, %c0_3] : memref<1x2x128xf32, #tpu.memory_space<vmem>>, vector<1x2x128xf32>
    %2 = vector.shape_cast %1 : vector<1x2x128xf32> to vector<2x128xf32>
    %3 = arith.mulf %2, %2 : vector<2x128xf32>
    %c0_4 = arith.constant 0 : index
    %c0_5 = arith.constant 0 : index
    %c0_6 = arith.constant 0 : index
    %4 = vector.load %arg4[%c0_4, %c0_5, %c0_6] : memref<1x2x128xf32, #tpu.memory_space<vmem>>, vector<1x2x128xf32>
    %5 = vector.shape_cast %4 : vector<1x2x128xf32> to vector<2x128xf32>
    %6 = arith.mulf %5, %5 : vector<2x128xf32>
    %7 = arith.addf %3, %6 : vector<2x128xf32>
    %c0_7 = arith.constant 0 : index
    %c0_8 = arith.constant 0 : index
    %c0_9 = arith.constant 0 : index
    %8 = vector.load %arg5[%c0_7, %c0_8, %c0_9] : memref<1x2x128xf32, #tpu.memory_space<vmem>>, vector<1x2x128xf32>
    %9 = vector.shape_cast %8 : vector<1x2x128xf32> to vector<2x128xf32>
    %10 = arith.mulf %9, %9 : vector<2x128xf32>
    %11 = arith.addf %7, %10 : vector<2x128xf32>
    %c0_10 = arith.constant 0 : index
    %c0_11 = arith.constant 0 : index
    %c0_12 = arith.constant 0 : index
    %12 = vector.load %arg6[%c0_10, %c0_11, %c0_12] : memref<1x2x128xf32, #tpu.memory_space<vmem>>, vector<1x2x128xf32>
    %13 = vector.shape_cast %12 : vector<1x2x128xf32> to vector<2x128xf32>
    %14 = arith.mulf %13, %13 : vector<2x128xf32>
    %15 = arith.addf %11, %14 : vector<2x128xf32>
    %cst = arith.constant 1.000000e-16 : f32
    %16 = vector.broadcast %cst : f32 to vector<2x128xf32>
    %17 = arith.maximumf %15, %16 : vector<2x128xf32>
    %18 = math.rsqrt %17 : vector<2x128xf32>
    %19 = arith.mulf %18, %0 : vector<2x128xf32>
    %c0_13 = arith.constant 0 : index
    %c0_14 = arith.constant 0 : index
    %c0_15 = arith.constant 0 : index
    %20 = vector.load %arg3[%c0_13, %c0_14, %c0_15] : memref<1x2x128xf32, #tpu.memory_space<vmem>>, vector<1x2x128xf32>
    %21 = vector.shape_cast %20 : vector<1x2x128xf32> to vector<2x128xf32>
    %22 = arith.mulf %21, %19 : vector<2x128xf32>
    %c0_16 = arith.constant 0 : index
    %c0_17 = arith.constant 0 : index
    %c0_18 = arith.constant 0 : index
    %23 = vector.load %arg4[%c0_16, %c0_17, %c0_18] : memref<1x2x128xf32, #tpu.memory_space<vmem>>, vector<1x2x128xf32>
    %24 = vector.shape_cast %23 : vector<1x2x128xf32> to vector<2x128xf32>
    %25 = arith.mulf %24, %19 : vector<2x128xf32>
    %26 = arith.maximumf %22, %25 : vector<2x128xf32>
    %c0_19 = arith.constant 0 : index
    %c0_20 = arith.constant 0 : index
    %c0_21 = arith.constant 0 : index
    %27 = vector.load %arg5[%c0_19, %c0_20, %c0_21] : memref<1x2x128xf32, #tpu.memory_space<vmem>>, vector<1x2x128xf32>
    %28 = vector.shape_cast %27 : vector<1x2x128xf32> to vector<2x128xf32>
    %29 = arith.mulf %28, %19 : vector<2x128xf32>
    %30 = arith.maximumf %26, %29 : vector<2x128xf32>
    %c0_22 = arith.constant 0 : index
    %c0_23 = arith.constant 0 : index
    %c0_24 = arith.constant 0 : index
    %31 = vector.load %arg6[%c0_22, %c0_23, %c0_24] : memref<1x2x128xf32, #tpu.memory_space<vmem>>, vector<1x2x128xf32>
    %32 = vector.shape_cast %31 : vector<1x2x128xf32> to vector<2x128xf32>
    %33 = arith.mulf %32, %19 : vector<2x128xf32>
    %34 = arith.maximumf %30, %33 : vector<2x128xf32>
    %c0_25 = arith.constant 0 : index
    %c0_26 = arith.constant 0 : index
    %c0_27 = arith.constant 0 : index
    %35 = vector.load %arg3[%c0_25, %c0_26, %c0_27] : memref<1x2x128xf32, #tpu.memory_space<vmem>>, vector<1x2x128xf32>
    %36 = vector.shape_cast %35 : vector<1x2x128xf32> to vector<2x128xf32>
    %37 = arith.mulf %36, %19 : vector<2x128xf32>
    %38 = arith.subf %37, %34 : vector<2x128xf32>
    %39 = math.exp %38 : vector<2x128xf32>
    %40 = arith.mulf %39, %36 : vector<2x128xf32>
    %c0_28 = arith.constant 0 : index
    %c0_29 = arith.constant 0 : index
    %c0_30 = arith.constant 0 : index
    %41 = vector.load %arg4[%c0_28, %c0_29, %c0_30] : memref<1x2x128xf32, #tpu.memory_space<vmem>>, vector<1x2x128xf32>
    %42 = vector.shape_cast %41 : vector<1x2x128xf32> to vector<2x128xf32>
    %43 = arith.mulf %42, %19 : vector<2x128xf32>
    %44 = arith.subf %43, %34 : vector<2x128xf32>
    %45 = math.exp %44 : vector<2x128xf32>
    %46 = arith.addf %39, %45 : vector<2x128xf32>
    %47 = arith.mulf %45, %42 : vector<2x128xf32>
    %48 = arith.addf %40, %47 : vector<2x128xf32>
    %c0_31 = arith.constant 0 : index
    %c0_32 = arith.constant 0 : index
    %c0_33 = arith.constant 0 : index
    %49 = vector.load %arg5[%c0_31, %c0_32, %c0_33] : memref<1x2x128xf32, #tpu.memory_space<vmem>>, vector<1x2x128xf32>
    %50 = vector.shape_cast %49 : vector<1x2x128xf32> to vector<2x128xf32>
    %51 = arith.mulf %50, %19 : vector<2x128xf32>
    %52 = arith.subf %51, %34 : vector<2x128xf32>
    %53 = math.exp %52 : vector<2x128xf32>
    %54 = arith.addf %46, %53 : vector<2x128xf32>
    %55 = arith.mulf %53, %50 : vector<2x128xf32>
    %56 = arith.addf %48, %55 : vector<2x128xf32>
    %c0_34 = arith.constant 0 : index
    %c0_35 = arith.constant 0 : index
    %c0_36 = arith.constant 0 : index
    %57 = vector.load %arg6[%c0_34, %c0_35, %c0_36] : memref<1x2x128xf32, #tpu.memory_space<vmem>>, vector<1x2x128xf32>
    %58 = vector.shape_cast %57 : vector<1x2x128xf32> to vector<2x128xf32>
    %59 = arith.mulf %58, %19 : vector<2x128xf32>
    %60 = arith.subf %59, %34 : vector<2x128xf32>
    %61 = math.exp %60 : vector<2x128xf32>
    %62 = arith.addf %54, %61 : vector<2x128xf32>
    %63 = arith.mulf %61, %58 : vector<2x128xf32>
    %64 = arith.addf %56, %63 : vector<2x128xf32>
    %65 = arith.divf %64, %62 : vector<2x128xf32>
    %c0_37 = arith.constant 0 : index
    %c0_38 = arith.constant 0 : index
    %c0_39 = arith.constant 0 : index
    %66 = vector.load %arg7[%c0_37, %c0_38, %c0_39] : memref<1x2x128xf32, #tpu.memory_space<vmem>>, vector<1x2x128xf32>
    %67 = vector.shape_cast %66 : vector<1x2x128xf32> to vector<2x128xf32>
    %68 = vector.shape_cast %65 : vector<2x128xf32> to vector<1x2x128xf32>
    tpu.vector_store %arg7[%c0_37, %c0_38, %c0_39], %68 {strides = array<i32>} : memref<1x2x128xf32, #tpu.memory_space<vmem>>, vector<1x2x128xf32>,
    return
  }
  func.func @transform_0(%arg0: i32, %arg1: i32) -> (i32, i32) {
    %c0_i32 = arith.constant 0 : i32
    %c0_i32_0 = arith.constant 0 : i32
    return %arg0, %c0_i32 : i32, i32
  }
  func.func @transform_1(%arg0: i32, %arg1: i32) -> (i32, i32, i32) {
    %c0_i32 = arith.constant 0 : i32
    %c0_i32_0 = arith.constant 0 : i32
    return %arg1, %arg0, %c0_i32 : i32, i32, i32
  }
  func.func @transform_2(%arg0: i32, %arg1: i32) -> (i32, i32, i32) {
    %c0_i32 = arith.constant 0 : i32
    %c0_i32_0 = arith.constant 0 : i32
    return %arg1, %arg0, %c0_i32 : i32, i32, i32
  }
  func.func @transform_3(%arg0: i32, %arg1: i32) -> (i32, i32, i32) {
    %c0_i32 = arith.constant 0 : i32
    %c0_i32_0 = arith.constant 0 : i32
    return %arg1, %arg0, %c0_i32 : i32, i32, i32
  }
  func.func @transform_4(%arg0: i32, %arg1: i32) -> (i32, i32, i32) {
    %c0_i32 = arith.constant 0 : i32
    %c0_i32_0 = arith.constant 0 : i32
    return %arg1, %arg0, %c0_i32 : i32, i32, i32
  }
  func.func @transform_5(%arg0: i32, %arg1: i32) -> (i32, i32, i32) {
    %c0_i32 = arith.constant 0 : i32
    %c0_i32_0 = arith.constant 0 : i32
    return %arg1, %arg0, %c0_i32 : i32, i32, i32
  }
}

</mosaic_0001>

<llo_original>
// kernel: tpu_custom_call.1
$region0: #{tpu_custom_call.1}
  #allocation0 [shape = 'u32[]', space=smem, size = 0x4, offset = 0x4, fixed_abs, tag = 'smem constant byte address 0x4 - core index']
  #allocation1 [shape = 'u32[72,128]{1,0:T(1,128)}', space=vmem, size = 0x9000, scoped, tag = 'internal scratch']
  %s0 = inlined_call_operand.hbm [shape: f32[2,128], index: 0, kind: input, shape index: {}]
  %s1 = inlined_call_operand.hbm [shape: f32[2,2,128], index: 1, kind: input, shape index: {}]
  %s2 = inlined_call_operand.hbm [shape: f32[2,2,128], index: 2, kind: input, shape index: {}]
  %s3 = inlined_call_operand.hbm [shape: f32[2,2,128], index: 3, kind: input, shape index: {}]
  %s4 = inlined_call_operand.hbm [shape: f32[2,2,128], index: 4, kind: input, shape index: {}]
  %s5 = inlined_call_operand.hbm [shape: f32[2,2,128], index: 5, kind: output, shape index: {}]
  %s6 = sld [smem:[#allocation0]]
  $region73: #{tpu_custom_call.1} parent=0
    _
  %s8 = ssub.s32 1, %s6
  %s9 = scalar_select 0, %s8, %s6
  $region1: #{tpu_custom_call.1} parent=0
    #allocation2 [shape = 'u8[1024]{0}', space=vmem, size = 0x400, scoped, tag = 'input window, operand 0, single buffered']
    #allocation3 [shape = 's32[2]{0}', space=sflag, size = 0x8, scoped, tag = 'scoped memory for tpu_custom_call.1']
    #allocation4 [shape = 's32[2]{0}', space=sflag, size = 0x8, scoped, tag = 'scoped memory for tpu_custom_call.1']
    #allocation5 [shape = 'u8[2048]{0}', space=vmem, size = 0x800, scoped, tag = 'input window, operand 1']
    #allocation6 [shape = 's32[2]{0}', space=sflag, size = 0x8, scoped, tag = 'scoped memory for tpu_custom_call.1']
    #allocation7 [shape = 'u8[2048]{0}', space=vmem, size = 0x800, scoped, tag = 'input window, operand 2']
    #allocation8 [shape = 'u8[2048]{0}', space=vmem, size = 0x800, scoped, tag = 'input window, operand 3']
    #allocation9 [shape = 's32[2]{0}', space=sflag, size = 0x8, scoped, tag = 'scoped memory for tpu_custom_call.1']
    #allocation10 [shape = 'u8[2048]{0}', space=vmem, size = 0x800, scoped, tag = 'input window, operand 4']
    #allocation11 [shape = 'u8[2048]{0}', space=vmem, size = 0x800, scoped, tag = 'output window, operand 0']
    %10 = vsyncpa [#allocation3], 0
    %11 = vsyncpa [#allocation6], 0
    %s12 = scalar_lea.sflag [#allocation6], 1
    %13 = vsyncpa %s12, 0
    %14 = vsyncpa [#allocation9], 0
    %s15 = scalar_lea.sflag [#allocation9], 1
    %16 = vsyncpa %s15, 0
    %17 = vsyncpa [#allocation4], 0
    %s18 = scalar_lea.sflag [#allocation4], 1
    %19 = vsyncpa %s18, 0
    loop: start=0, step=1, limit=4
    $region2: #{tpu_custom_call.1} parent=1 // loop_pre_header
      _
    $region3: #{tpu_custom_call.1} parent=1 // loop_header
      %s21 = sphi 0, %s25
      %p22 = scmp.ge.s32.totalorder %s21, 4
      %s28 = sphi 0, %s40
      %s29 = sphi 0, %s36
      %s30 = sphi 0, %s28
      %s31 = sphi 0, %s29
      %s32 = sphi 0, %s30
      %s33 = sphi 0, %s31
      %s43 = sphi 0, %s45
      %s46 = sphi 0, %s43
      %s47 = sphi 0, %s46
      %s63 = sphi 0, %s47
      %s71 = sphi 0, %s73
      %s74 = sphi 0, %s71
      %s75 = sphi 0, %s74
      %s91 = sphi 0, %s75
      %s99 = sphi 0, %s101
      %s102 = sphi 0, %s99
      %s103 = sphi 0, %s102
      %s119 = sphi 0, %s103
      %s127 = sphi 0, %s129
      %s130 = sphi 0, %s127
      %s131 = sphi 0, %s130
      %s147 = sphi 0, %s131
      %s155 = sphi 0, %s157
      %s158 = sphi 0, %s155
      %s159 = sphi 0, %s158
      %s175 = sphi 0, %s159
      %s183 = sphi 0, %s185
      %s186 = sphi 0, %s183
      %s187 = sphi 0, %s186
      %s203 = sphi 0, %s187
    $region4: #{tpu_custom_call.1} parent=1 // loop_header_branch
      %24 = sbr.rel (%p22) target = $region8
    $region5: #{tpu_custom_call.1} parent=1 // loop_body
      %s26 = ssub.s32 %s21, 1
      %s27 = ssub.s32 %s21, 2
      %s34 = sadd.s32 1, %s29
      %p35 = scmp.ge.s32.totalorder %s34, 2
      %s36 = scalar_select %p35, 0, %s34
      %s37 = sadd.s32 1, %s28
      %s38 = scalar_select %p35, %s37, %s28
      %p39 = scmp.ge.s32.totalorder %s38, 1
      %s40 = scalar_select %p39, 0, %s38
      %s41 = ssub.s32 %s28, %s40
      %p42 = scmp.eq.s32.totalorder %s41, 0
      %s44 = sadd.s32 %s43, 1
      %s45 = scalar_select %p42, %s43, %s44
      %p48 = pneg %p42
      %p49 = scmp.eq.s32.totalorder %s21, 1
      %p50 = por %p48, %p49
      %p51 = scmp.ne.s32.totalorder %s43, %s46
      %p52 = scmp.eq.s32.totalorder %s21, 0
      %p53 = por %p51, %p52
      %p54 = scmp.ne.s32.totalorder %s43, %s46
      %p55 = scmp.eq.s32.totalorder %s26, 1
      %p56 = por %p54, %p55
      %p57 = scmp.ne.s32.totalorder %s46, %s47
      %p58 = scmp.eq.s32.totalorder %s26, 0
      %p59 = por %p57, %p58
      %p60 = scmp.ne.s32.totalorder %s46, %s47
      %p61 = scmp.eq.s32.totalorder %s27, 1
      %p62 = por %p60, %p61
      %p64 = scmp.ne.s32.totalorder %s47, %s63
      %p65 = scmp.eq.s32.totalorder %s27, 0
      %p66 = por %p64, %p65
      %s67 = ssub.s32 %s29, %s36
      %s68 = ssub.s32 %s28, %s40
      %s69 = sor.u32 %s67, %s68
      %p70 = scmp.eq.s32.totalorder %s69, 0
      %s72 = sadd.s32 %s71, 1
      %s73 = scalar_select %p70, %s71, %s72
      %p76 = pneg %p70
      %p77 = scmp.eq.s32.totalorder %s21, 1
      %p78 = por %p76, %p77
      %p79 = scmp.ne.s32.totalorder %s71, %s74
      %p80 = scmp.eq.s32.totalorder %s21, 0
      %p81 = por %p79, %p80
      %p82 = scmp.ne.s32.totalorder %s71, %s74
      %p83 = scmp.eq.s32.totalorder %s26, 1
      %p84 = por %p82, %p83
      %p85 = scmp.ne.s32.totalorder %s74, %s75
      %p86 = scmp.eq.s32.totalorder %s26, 0
      %p87 = por %p85, %p86
      %p88 = scmp.ne.s32.totalorder %s74, %s75
      %p89 = scmp.eq.s32.totalorder %s27, 1
      %p90 = por %p88, %p89
      %p92 = scmp.ne.s32.totalorder %s75, %s91
      %p93 = scmp.eq.s32.totalorder %s27, 0
      %p94 = por %p92, %p93
      %s95 = ssub.s32 %s29, %s36
      %s96 = ssub.s32 %s28, %s40
      %s97 = sor.u32 %s95, %s96
      %p98 = scmp.eq.s32.totalorder %s97, 0
      %s100 = sadd.s32 %s99, 1
      %s101 = scalar_select %p98, %s99, %s100
      %p104 = pneg %p98
      %p105 = scmp.eq.s32.totalorder %s21, 1
      %p106 = por %p104, %p105
      %p107 = scmp.ne.s32.totalorder %s99, %s102
      %p108 = scmp.eq.s32.totalorder %s21, 0
      %p109 = por %p107, %p108
      %p110 = scmp.ne.s32.totalorder %s99, %s102
      %p111 = scmp.eq.s32.totalorder %s26, 1
      %p112 = por %p110, %p111
      %p113 = scmp.ne.s32.totalorder %s102, %s103
      %p114 = scmp.eq.s32.totalorder %s26, 0
      %p115 = por %p113, %p114
      %p116 = scmp.ne.s32.totalorder %s102, %s103
      %p117 = scmp.eq.s32.totalorder %s27, 1
      %p118 = por %p116, %p117
      %p120 = scmp.ne.s32.totalorder %s103, %s119
      %p121 = scmp.eq.s32.totalorder %s27, 0
      %p122 = por %p120, %p121
      %s123 = ssub.s32 %s29, %s36
      %s124 = ssub.s32 %s28, %s40
      %s125 = sor.u32 %s123, %s124
      %p126 = scmp.eq.s32.totalorder %s125, 0
      %s128 = sadd.s32 %s127, 1
      %s129 = scalar_select %p126, %s127, %s128
      %p132 = pneg %p126
      %p133 = scmp.eq.s32.totalorder %s21, 1
      %p134 = por %p132, %p133
      %p135 = scmp.ne.s32.totalorder %s127, %s130
      %p136 = scmp.eq.s32.totalorder %s21, 0
      %p137 = por %p135, %p136
      %p138 = scmp.ne.s32.totalorder %s127, %s130
      %p139 = scmp.eq.s32.totalorder %s26, 1
      %p140 = por %p138, %p139
      %p141 = scmp.ne.s32.totalorder %s130, %s131
      %p142 = scmp.eq.s32.totalorder %s26, 0
      %p143 = por %p141, %p142
      %p144 = scmp.ne.s32.totalorder %s130, %s131
      %p145 = scmp.eq.s32.totalorder %s27, 1
      %p146 = por %p144, %p145
      %p148 = scmp.ne.s32.totalorder %s131, %s147
      %p149 = scmp.eq.s32.totalorder %s27, 0
      %p150 = por %p148, %p149
      %s151 = ssub.s32 %s29, %s36
      %s152 = ssub.s32 %s28, %s40
      %s153 = sor.u32 %s151, %s152
      %p154 = scmp.eq.s32.totalorder %s153, 0
      %s156 = sadd.s32 %s155, 1
      %s157 = scalar_select %p154, %s155, %s156
      %p160 = pneg %p154
      %p161 = scmp.eq.s32.totalorder %s21, 1
      %p162 = por %p160, %p161
      %p163 = scmp.ne.s32.totalorder %s155, %s158
      %p164 = scmp.eq.s32.totalorder %s21, 0
      %p165 = por %p163, %p164
      %p166 = scmp.ne.s32.totalorder %s155, %s158
      %p167 = scmp.eq.s32.totalorder %s26, 1
      %p168 = por %p166, %p167
      %p169 = scmp.ne.s32.totalorder %s158, %s159
      %p170 = scmp.eq.s32.totalorder %s26, 0
      %p171 = por %p169, %p170
      %p172 = scmp.ne.s32.totalorder %s158, %s159
      %p173 = scmp.eq.s32.totalorder %s27, 1
      %p174 = por %p172, %p173
      %p176 = scmp.ne.s32.totalorder %s159, %s175
      %p177 = scmp.eq.s32.totalorder %s27, 0
      %p178 = por %p176, %p177
      %s179 = ssub.s32 %s29, %s36
      %s180 = ssub.s32 %s28, %s40
      %s181 = sor.u32 %s179, %s180
      %p182 = scmp.eq.s32.totalorder %s181, 0
      %s184 = sadd.s32 %s183, 1
      %s185 = scalar_select %p182, %s183, %s184
      %p188 = pneg %p182
      %p189 = scmp.eq.s32.totalorder %s21, 1
      %p190 = por %p188, %p189
      %p191 = scmp.ne.s32.totalorder %s183, %s186
      %p192 = scmp.eq.s32.totalorder %s21, 0
      %p193 = por %p191, %p192
      %p194 = scmp.ne.s32.totalorder %s183, %s186
      %p195 = scmp.eq.s32.totalorder %s26, 1
      %p196 = por %p194, %p195
      %p197 = scmp.ne.s32.totalorder %s186, %s187
      %p198 = scmp.eq.s32.totalorder %s26, 0
      %p199 = por %p197, %p198
      %p200 = scmp.ne.s32.totalorder %s186, %s187
      %p201 = scmp.eq.s32.totalorder %s27, 1
      %p202 = por %p200, %p201
      %p204 = scmp.ne.s32.totalorder %s187, %s203
      %p205 = scmp.eq.s32.totalorder %s27, 0
      %p206 = por %p204, %p205
      %p207 = scmp.le.s32.totalorder 1, %s21
      %p208 = scmp.lt.s32.totalorder %s21, 3
      %p209 = pnand %p207, %p208
      %p210 = pneg %p209
      // Predicated region
      $region9: #{tpu_custom_call.1} parent=5 // pred_check
        _
      $region10: #{tpu_custom_call.1} parent=5 // pred_check_branch
        %212 = sbr.rel (%p209) target = $region12
      $region11: #{tpu_custom_call.1} parent=5 // pred_region
        %s213 = ssub.s32 %s21, 1
        // Predicated region
        $region13: #{tpu_custom_call.1} parent=11 // pred_check
          %p214 = pneg %p59
        $region14: #{tpu_custom_call.1} parent=11 // pred_check_branch
          %216 = sbr.rel (%p214) target = $region16
        $region15: #{tpu_custom_call.1} parent=11 // pred_region
          %218 = vsyncadd [#allocation3], 0
          %s219 = smul.addr %s30, 2
          %s220 = scalar_lea.hbm %s0, %s219
          %s222 = sshll.u32 %s220, 4
          %s223 = int_to_ptr.hbm [resolvable:$true] %s222
          %s224 = sshll.u32 [#allocation2], 4
          %s225 = int_to_ptr.vmem [resolvable:$true] %s224
          %227 = dma.hbm_to_vmem [thread:$0]  %s223, 32, %s225, [#allocation3]
        $region16: #{tpu_custom_call.1} parent=11 // pred_fallthru
          _
      $region12: #{tpu_custom_call.1} parent=5 // pred_fallthru
        _
      %p228 = scmp.lt.s32.totalorder %s21, 2
      // Predicated region
      $region17: #{tpu_custom_call.1} parent=5 // pred_check
        %p229 = pneg %p228
      $region18: #{tpu_custom_call.1} parent=5 // pred_check_branch
        %231 = sbr.rel (%p229) target = $region20
      $region19: #{tpu_custom_call.1} parent=5 // pred_region
        // Predicated region
        $region21: #{tpu_custom_call.1} parent=19 // pred_check
          %p232 = pneg %p81
        $region22: #{tpu_custom_call.1} parent=19 // pred_check_branch
          %234 = sbr.rel (%p232) target = $region24
        $region23: #{tpu_custom_call.1} parent=19 // pred_region
          %s235 = sand.u32 %s21, 1
          %s236 = scalar_lea.sflag [#allocation6], %s235
          %s237 = sand.u32 %s71, 1
          %s238 = smul.addr %s237, 2
          %s239 = scalar_lea.vmem [#allocation5], %s238
          %241 = vsyncadd %s236, 0
          %s242 = sadd.s32 %s28, %s29
          %s243 = smul.addr %s242, 2
          %s244 = scalar_lea.hbm %s1, %s243
          %s246 = sshll.u32 %s244, 4
          %s247 = int_to_ptr.hbm [resolvable:$true] %s246
          %s248 = sshll.u32 %s239, 4
          %s249 = int_to_ptr.vmem [resolvable:$true] %s248
          %251 = dma.hbm_to_vmem [thread:$0]  %s247, 32, %s249, %s236
        $region24: #{tpu_custom_call.1} parent=19 // pred_fallthru
          _
        // Predicated region
        $region25: #{tpu_custom_call.1} parent=19 // pred_check
          %p252 = pneg %p109
        $region26: #{tpu_custom_call.1} parent=19 // pred_check_branch
          %254 = sbr.rel (%p252) target = $region28
        $region27: #{tpu_custom_call.1} parent=19 // pred_region
          %s255 = sand.u32 %s21, 1
          %s256 = scalar_lea.sflag [#allocation6], %s255
          %s257 = sand.u32 %s99, 1
          %s258 = smul.addr %s257, 2
          %s259 = scalar_lea.vmem [#allocation7], %s258
          %261 = vsyncadd %s256, 0
          %s262 = sadd.s32 %s28, %s29
          %s263 = smul.addr %s262, 2
          %s264 = scalar_lea.hbm %s2, %s263
          %s266 = sshll.u32 %s264, 4
          %s267 = int_to_ptr.hbm [resolvable:$true] %s266
          %s268 = sshll.u32 %s259, 4
          %s269 = int_to_ptr.vmem [resolvable:$true] %s268
          %271 = dma.hbm_to_vmem [thread:$0]  %s267, 32, %s269, %s256
        $region28: #{tpu_custom_call.1} parent=19 // pred_fallthru
          _
        // Predicated region
        $region29: #{tpu_custom_call.1} parent=19 // pred_check
          %p272 = pneg %p137
        $region30: #{tpu_custom_call.1} parent=19 // pred_check_branch
          %274 = sbr.rel (%p272) target = $region32
        $region31: #{tpu_custom_call.1} parent=19 // pred_region
          %s275 = sand.u32 %s21, 1
          %s276 = scalar_lea.sflag [#allocation9], %s275
          %s277 = sand.u32 %s127, 1
          %s278 = smul.addr %s277, 2
          %s279 = scalar_lea.vmem [#allocation8], %s278
          %281 = vsyncadd %s276, 0
          %s282 = sadd.s32 %s28, %s29
          %s283 = smul.addr %s282, 2
          %s284 = scalar_lea.hbm %s3, %s283
          %s286 = sshll.u32 %s284, 4
          %s287 = int_to_ptr.hbm [resolvable:$true] %s286
          %s288 = sshll.u32 %s279, 4
          %s289 = int_to_ptr.vmem [resolvable:$true] %s288
          %291 = dma.hbm_to_vmem [thread:$0]  %s287, 32, %s289, %s276
        $region32: #{tpu_custom_call.1} parent=19 // pred_fallthru
          _
        // Predicated region
        $region33: #{tpu_custom_call.1} parent=19 // pred_check
          %p292 = pneg %p165
        $region34: #{tpu_custom_call.1} parent=19 // pred_check_branch
          %294 = sbr.rel (%p292) target = $region36
        $region35: #{tpu_custom_call.1} parent=19 // pred_region
          %s295 = sand.u32 %s21, 1
          %s296 = scalar_lea.sflag [#allocation9], %s295
          %s297 = sand.u32 %s155, 1
          %s298 = smul.addr %s297, 2
          %s299 = scalar_lea.vmem [#allocation10], %s298
          %301 = vsyncadd %s296, 0
          %s302 = sadd.s32 %s28, %s29
          %s303 = smul.addr %s302, 2
          %s304 = scalar_lea.hbm %s4, %s303
          %s306 = sshll.u32 %s304, 4
          %s307 = int_to_ptr.hbm [resolvable:$true] %s306
          %s308 = sshll.u32 %s299, 4
          %s309 = int_to_ptr.vmem [resolvable:$true] %s308
          %311 = dma.hbm_to_vmem [thread:$0]  %s307, 32, %s309, %s296
        $region36: #{tpu_custom_call.1} parent=19 // pred_fallthru
          _
      $region20: #{tpu_custom_call.1} parent=5 // pred_fallthru
        _
      %p312 = scmp.le.s32.totalorder 1, %s21
      %p313 = scmp.lt.s32.totalorder %s21, 3
      %p314 = pnand %p312, %p313
      %p315 = pneg %p314
      // Predicated region
      $region37: #{tpu_custom_call.1} parent=5 // pred_check
        _
      $region38: #{tpu_custom_call.1} parent=5 // pred_check_branch
        %317 = sbr.rel (%p314) target = $region40
      $region39: #{tpu_custom_call.1} parent=5 // pred_region
        %s318 = ssub.s32 %s21, 1
        // Predicated region
        $region41: #{tpu_custom_call.1} parent=39 // pred_check
          %p319 = pneg %p59
        $region42: #{tpu_custom_call.1} parent=39 // pred_check_branch
          %321 = sbr.rel (%p319) target = $region44
        $region43: #{tpu_custom_call.1} parent=39 // pred_region
          %323 = dma.done [#allocation3], 32
        $region44: #{tpu_custom_call.1} parent=39 // pred_fallthru
          _
        %s324 = sand.u32 %s26, 1
        %s325 = scalar_lea.sflag [#allocation6], %s324
        %s326 = sand.u32 %s74, 1
        %s327 = smul.addr %s326, 2
        %s328 = scalar_lea.vmem [#allocation5], %s327
        // Predicated region
        $region45: #{tpu_custom_call.1} parent=39 // pred_check
          %p329 = pneg %p87
        $region46: #{tpu_custom_call.1} parent=39 // pred_check_branch
          %331 = sbr.rel (%p329) target = $region48
        $region47: #{tpu_custom_call.1} parent=39 // pred_region
          %333 = dma.done %s325, 32
        $region48: #{tpu_custom_call.1} parent=39 // pred_fallthru
          _
        %s334 = sand.u32 %s26, 1
        %s335 = scalar_lea.sflag [#allocation6], %s334
        %s336 = sand.u32 %s102, 1
        %s337 = smul.addr %s336, 2
        %s338 = scalar_lea.vmem [#allocation7], %s337
        // Predicated region
        $region49: #{tpu_custom_call.1} parent=39 // pred_check
          %p339 = pneg %p115
        $region50: #{tpu_custom_call.1} parent=39 // pred_check_branch
          %341 = sbr.rel (%p339) target = $region52
        $region51: #{tpu_custom_call.1} parent=39 // pred_region
          %343 = dma.done %s335, 32
        $region52: #{tpu_custom_call.1} parent=39 // pred_fallthru
          _
        %s344 = sand.u32 %s26, 1
        %s345 = scalar_lea.sflag [#allocation9], %s344
        %s346 = sand.u32 %s130, 1
        %s347 = smul.addr %s346, 2
        %s348 = scalar_lea.vmem [#allocation8], %s347
        // Predicated region
        $region53: #{tpu_custom_call.1} parent=39 // pred_check
          %p349 = pneg %p143
        $region54: #{tpu_custom_call.1} parent=39 // pred_check_branch
          %351 = sbr.rel (%p349) target = $region56
        $region55: #{tpu_custom_call.1} parent=39 // pred_region
          %353 = dma.done %s345, 32
        $region56: #{tpu_custom_call.1} parent=39 // pred_fallthru
          _
        %s354 = sand.u32 %s26, 1
        %s355 = scalar_lea.sflag [#allocation9], %s354
        %s356 = sand.u32 %s158, 1
        %s357 = smul.addr %s356, 2
        %s358 = scalar_lea.vmem [#allocation10], %s357
        // Predicated region
        $region57: #{tpu_custom_call.1} parent=39 // pred_check
          %p359 = pneg %p171
        $region58: #{tpu_custom_call.1} parent=39 // pred_check_branch
          %361 = sbr.rel (%p359) target = $region60
        $region59: #{tpu_custom_call.1} parent=39 // pred_region
          %363 = dma.done %s355, 32
        $region60: #{tpu_custom_call.1} parent=39 // pred_fallthru
          _
        %p364 = pneg %p59
        %p365 = pneg %p56
        %s366 = sand.u32 %s26, 1
        %s367 = scalar_lea.sflag [#allocation6], %s366
        %s368 = sand.u32 %s74, 1
        %s369 = smul.addr %s368, 2
        %s370 = scalar_lea.vmem [#allocation5], %s369
        %p371 = pneg %p87
        %p372 = pneg %p84
        %s373 = sand.u32 %s26, 1
        %s374 = scalar_lea.sflag [#allocation6], %s373
        %s375 = sand.u32 %s102, 1
        %s376 = smul.addr %s375, 2
        %s377 = scalar_lea.vmem [#allocation7], %s376
        %p378 = pneg %p115
        %p379 = pneg %p112
        %s380 = sand.u32 %s26, 1
        %s381 = scalar_lea.sflag [#allocation9], %s380
        %s382 = sand.u32 %s130, 1
        %s383 = smul.addr %s382, 2
        %s384 = scalar_lea.vmem [#allocation8], %s383
        %p385 = pneg %p143
        %p386 = pneg %p140
        %s387 = sand.u32 %s26, 1
        %s388 = scalar_lea.sflag [#allocation9], %s387
        %s389 = sand.u32 %s158, 1
        %s390 = smul.addr %s389, 2
        %s391 = scalar_lea.vmem [#allocation10], %s390
        %p392 = pneg %p171
        %p393 = pneg %p168
        %p394 = pneg %p199
        %p395 = pneg %p196
        %s396 = sand.u32 %s186, 1
        %s397 = scalar_lea.sflag [#allocation4], %s396
        %s398 = sand.u32 %s186, 1
        %s399 = smul.addr %s398, 2
        %s400 = scalar_lea.vmem [#allocation11], %s399
        %v401 = vld [vmem:[#allocation2] sm:$0x3]
        %v402 = vld [vmem:[%s328] sm:$0x3]
        %v403 = vmul.f32 %v402, %v402
        %v404 = vld [vmem:[%s338] sm:$0x3]
        %v405 = vmul.f32 %v404, %v404
        %v406 = vadd.f32 %v403, %v405
        %v407 = vld [vmem:[%s348] sm:$0x3]
        %v408 = vmul.f32 %v407, %v407
        %v409 = vadd.f32 %v406, %v408
        %v410 = vld [vmem:[%s358] sm:$0x3]
        %v411 = vmul.f32 %v410, %v410
        %v412 = vadd.f32 %v409, %v411
        %v413 = vmax.f32 %v412, 1e-16
        %v414 = vrsqrt.pop %v413
        %v415 = vmul.f32 %v414, %v413
        %v416 = vmul.f32 %v415, %v414
        %v417 = vmul.f32 0.5, %v416
        %v418 = vsub.f32 1.5, %v417
        %v419 = vmul.f32 %v414, %v418
        %vm420 = vweird.f32 %v413
        %vm421 = vweird.f32 %v414
        %vm422 = vmor %vm420, %vm421
        %v423 = vsel %vm422, %v414, %v419
        %v424 = vmul.f32 %v423, %v401
        %v425 = vmul.f32 %v402, %v424
        %v426 = vmul.f32 %v404, %v424
        %v427 = vmax.f32 %v425, %v426
        %v428 = vmul.f32 %v407, %v424
        %v429 = vmax.f32 %v427, %v428
        %v430 = vmul.f32 %v410, %v424
        %v431 = vmax.f32 %v429, %v430
        %v432 = vsub.f32 %v425, %v431
        %v433 = vmul.f32 %v432, 1.442695
        %v434 = vpow.pop %v433
        %v435 = vmul.f32 %v434, %v402
        %v436 = vsub.f32 %v426, %v431
        %v437 = vmul.f32 %v436, 1.442695
        %v438 = vpow.pop %v437
        %v439 = vadd.f32 %v434, %v438
        %v440 = vmul.f32 %v438, %v404
        %v441 = vadd.f32 %v435, %v440
        %v442 = vsub.f32 %v428, %v431
        %v443 = vmul.f32 %v442, 1.442695
        %v444 = vpow.pop %v443
        %v445 = vadd.f32 %v439, %v444
        %v446 = vmul.f32 %v444, %v407
        %v447 = vadd.f32 %v441, %v446
        %v448 = vsub.f32 %v430, %v431
        %v449 = vmul.f32 %v448, 1.442695
        %v450 = vpow.pop %v449
        %v451 = vadd.f32 %v445, %v450
        %v452 = vmul.f32 %v450, %v410
        %v453 = vadd.f32 %v447, %v452
        %v454 = vrcp.pop %v451
        %v455 = vmul.f32 %v451, %v454
        %v456 = vsub.f32 1.0, %v455
        %v457 = vmul.f32 %v454, %v456
        %v458 = vadd.f32 %v454, %v457
        %vm459 = vweird.f32 %v451
        %vm460 = vweird.f32 %v454
        %vm461 = vmor %vm459, %vm460
        %v462 = vsel %vm461, %v454, %v458
        %v463 = vand.u32 2147483647, %v451
        %vm464 = vcmp.eq.f32.partialorder %v463, 8.507059e+37
        %v465 = vand.u32 %v451, 2147483648
        %v466 = vor.u32 1.1754944e-38, %v465
        %v467 = vsel %vm464, %v466, %v462
        %v468 = vmul.f32 %v453, %v467
        %469 = vst [vmem:[%s400] sm:$0x3] %v468
        %s470 = sand.u32 %s186, 1
        %s471 = scalar_lea.sflag [#allocation4], %s470
        %s472 = sand.u32 %s186, 1
        %s473 = smul.addr %s472, 2
        %s474 = scalar_lea.vmem [#allocation11], %s473
        // Predicated region
        $region61: #{tpu_custom_call.1} parent=39 // pred_check
          %p475 = pneg %p196
        $region62: #{tpu_custom_call.1} parent=39 // pred_check_branch
          %477 = sbr.rel (%p475) target = $region64
        $region63: #{tpu_custom_call.1} parent=39 // pred_region
          %479 = vsyncadd %s471, 0
          %s480 = sadd.s32 %s30, %s31
          %s481 = smul.addr %s480, 2
          %s482 = scalar_lea.hbm %s5, %s481
          %s484 = sshll.u32 %s474, 4
          %s485 = int_to_ptr.vmem [resolvable:$true] %s484
          %s486 = sshll.u32 %s482, 4
          %s487 = int_to_ptr.hbm [resolvable:$true] %s486
          %489 = dma.vmem_to_hbm [thread:$0]  %s485, 32, %s487, %s471
        $region64: #{tpu_custom_call.1} parent=39 // pred_fallthru
          _
      $region40: #{tpu_custom_call.1} parent=5 // pred_fallthru
        _
      %p490 = scmp.le.s32.totalorder 2, %s21
      // Predicated region
      $region65: #{tpu_custom_call.1} parent=5 // pred_check
        %p491 = pneg %p490
      $region66: #{tpu_custom_call.1} parent=5 // pred_check_branch
        %493 = sbr.rel (%p491) target = $region68
      $region67: #{tpu_custom_call.1} parent=5 // pred_region
        %s494 = ssub.s32 %s21, 2
        // Predicated region
        $region69: #{tpu_custom_call.1} parent=67 // pred_check
          %p495 = pneg %p202
        $region70: #{tpu_custom_call.1} parent=67 // pred_check_branch
          %497 = sbr.rel (%p495) target = $region72
        $region71: #{tpu_custom_call.1} parent=67 // pred_region
          %s498 = sand.u32 %s187, 1
          %s499 = scalar_lea.sflag [#allocation4], %s498
          %s500 = sand.u32 %s187, 1
          %s501 = smul.addr %s500, 2
          %s502 = scalar_lea.vmem [#allocation11], %s501
          %504 = dma.done %s499, 32
        $region72: #{tpu_custom_call.1} parent=67 // pred_fallthru
          _
      $region68: #{tpu_custom_call.1} parent=5 // pred_fallthru
        _
    $region6: #{tpu_custom_call.1} parent=1 // loop_footer
      %s25 = sadd.s32 1, %s21
    $region7: #{tpu_custom_call.1} parent=1 // loop_footer_branch
      %20 = sbr.rel target = $region3
    $region8: #{tpu_custom_call.1} parent=1 // loop_exit
      _
    %505 = vsyncpa [#allocation3], 1
    %s506 = scalar_lea.sflag [#allocation3], 1
    %507 = vsyncpa %s506, 1
    %508 = vsyncpa [#allocation6], 1
    %s509 = scalar_lea.sflag [#allocation6], 1
    %510 = vsyncpa %s509, 1
    %511 = vsyncpa [#allocation9], 1
    %s512 = scalar_lea.sflag [#allocation9], 1
    %513 = vsyncpa %s512, 1
    %514 = vsyncpa [#allocation4], 1
    %s515 = scalar_lea.sflag [#allocation4], 1
    %516 = vsyncpa %s515, 1

</llo_original>
